<compile_context>
chip_gen: v7x
topology: tpu7x:2x2x1
jax: 0.10.0
libtpu: 0.0.40
codegen_flags: <defaults>
</compile_context>

<pallas_src>
import functools
import math

import jax
import jax.numpy as jnp
from jax.experimental import pallas as pl
from jax.experimental.pallas import tpu as pltpu


def _round_up(x, m):
    return ((x + m - 1) // m) * m


# ---------------------------------------------------------------------------
# Per-generation hardware configuration (Python / trace time).
# ---------------------------------------------------------------------------
def _tpu_generation():
    try:
        kind = jax.devices()[0].device_kind.lower()
    except Exception:
        return 6
    for g in (7, 6, 5, 4, 3, 2):
        if f"v{g}" in kind:
            return g
    return 6


def _vmem_capacity_bytes(gen):
    try:
        return int(pltpu.get_tpu_info().vmem_capacity_bytes)
    except Exception:
        return (64 if gen >= 7 else 128) * 1024 * 1024


@functools.lru_cache(maxsize=None)
def _hw_config():
    gen = _tpu_generation()
    vmem = _vmem_capacity_bytes(gen)
    if gen >= 7:
        # 64 MiB VMEM / TC, 2 TCs/chip, bf16 VALU, 2x256^2 MXU.
        return dict(gen=gen, tm=512, align=256, act_bf16=True,
                    vmem_cap=max(vmem - 12 * 1024 * 1024, 32 * 1024 * 1024),
                    min_row_tiles=2, weight_buffers=2)
    if gen == 6:
        # 128 MiB VMEM, bf16 VALU, 2x256^2 MXU.
        return dict(gen=gen, tm=1024, align=256, act_bf16=True,
                    vmem_cap=min(max(vmem - 24 * 1024 * 1024, 32 * 1024 * 1024),
                                 100 * 1024 * 1024),
                    min_row_tiles=1, weight_buffers=2)
    # v5e and older / unknown: no bf16 VALU, 4x128^2 MXU, deeper weight buffering.
    return dict(gen=gen, tm=512, align=128, act_bf16=False,
                vmem_cap=min(max(vmem - 24 * 1024 * 1024, 32 * 1024 * 1024),
                             100 * 1024 * 1024),
                min_row_tiles=1, weight_buffers=3)


# ---------------------------------------------------------------------------
# Kernels
# ---------------------------------------------------------------------------
def _gelu_mxu_operand(h_f32, *, act_bf16, out_dtype):
    """Exact (erf) GELU. erf is evaluated in f32 (safe lowering on all TPU
    generations); the surrounding elementwise math runs in bf16 on chips with a
    bf16 VALU (v6e/v7x) to halve VPU work. Result is cast to the MXU operand
    dtype for the second matmul."""
    erf = jax.lax.erf(h_f32 * jnp.float32(0.7071067811865476))
    if act_bf16:
        g = h_f32.astype(jnp.bfloat16) * (erf.astype(jnp.bfloat16) + 1.0) * 0.5
    else:
        g = 0.5 * h_f32 * (1.0 + erf)
    return g.astype(out_dtype)


def _mlp_kernel_fused(x_ref, w1_ref, b1_ref, w2_ref, b2_ref, o_ref, *, act_bf16):
    # Single H tile: weights are grid-invariant (loaded once); no accumulator.
    h = jnp.dot(x_ref[...], w1_ref[...], preferred_element_type=jnp.float32)
    h = h + b1_ref[...]
    g = _gelu_mxu_operand(h, act_bf16=act_bf16, out_dtype=w2_ref.dtype)
    out = jnp.dot(g, w2_ref[...], preferred_element_type=jnp.float32)
    # dropout with p=0.0 is identity -> omitted
    o_ref[...] = (out + b2_ref[...]).astype(o_ref.dtype)


def _mlp_kernel_split(x_ref, w1_ref, b1_ref, w2_ref, b2_ref, o_ref, acc_ref,
                      *, act_bf16):
    # Hidden dim streamed in tiles; f32 accumulator resident across the H axis.
    hk = pl.program_id(1)

    @pl.when(hk == 0)
    def _():
        acc_ref[...] = jnp.zeros_like(acc_ref)

    h = jnp.dot(x_ref[...], w1_ref[...], preferred_element_type=jnp.float32)
    h = h + b1_ref[...]
    g = _gelu_mxu_operand(h, act_bf16=act_bf16, out_dtype=w2_ref.dtype)
    acc_ref[...] += jnp.dot(g, w2_ref[...], preferred_element_type=jnp.float32)

    @pl.when(hk == pl.num_programs(1) - 1)
    def _():
        o_ref[...] = (acc_ref[...] + b2_ref[...]).astype(o_ref.dtype)


def _streamed_spec(shape, index_map, buffers):
    """BlockSpec for a streamed weight tile; request deeper buffering on v5e."""
    if buffers != 2:
        try:
            return pl.BlockSpec(shape, index_map, pipeline_mode=pl.Buffered(buffers))
        except Exception:
            return pl.BlockSpec(shape, index_map)
    return pl.BlockSpec(shape, index_map)


# ---------------------------------------------------------------------------
# Planning / weight preparation / wrapper
# ---------------------------------------------------------------------------
def plan_mlp(t, d_in, h_dim, d_out, *, tm=None, th=None,
             compute_dtype=jnp.bfloat16, out_dtype=jnp.float32):
    cfg = _hw_config()
    align = cfg["align"]
    csize = jnp.dtype(compute_dtype).itemsize
    osize = jnp.dtype(out_dtype).itemsize

    def pad_dim(d):
        return _round_up(d, align if d >= align else 128)

    d_in_p, d_out_p, h_full = pad_dim(d_in), pad_dim(d_out), pad_dim(h_dim)

    # Hidden tiling: keep full padded W1/W2 VMEM-resident (grid-invariant,
    # DMA'd exactly once) whenever their double-buffered copies fit the budget.
    w_bytes = (d_in_p * h_full + h_full * d_out_p) * csize + (h_full + d_out_p) * 4
    if th is None:
        th_eff = h_full if 2 * w_bytes <= cfg["vmem_cap"] // 2 \
            else min(h_full, max(align, 512))
    else:
        th_eff = min(_round_up(th, 128), h_full)
    fused = th_eff >= h_full
    h_p = h_full if fused else _round_up(h_dim, th_eff)

    # Row tiling: large tiles raise arithmetic intensity on streamed weights;
    # on v7x keep >= 2 row tiles so the "parallel" axis feeds both TensorCores.
    tm_eff = tm if tm is not None else cfg["tm"]
    tm_eff = max(16, _round_up(min(tm_eff, _round_up(t, 16)), 16))
    if cfg["min_row_tiles"] > 1 and t > 16:
        tm_eff = min(tm_eff, max(16, _round_up(-(-t // cfg["min_row_tiles"]), 16)))

    def footprint(tm_, th_, fused_):
        nbw = 2 if fused_ else cfg["weight_buffers"]
        b = 2 * tm_ * d_in_p * csize                          # x tiles
        b += nbw * (d_in_p * th_ + th_ * d_out_p) * csize     # w1 / w2 tiles
        b += 2 * (th_ + d_out_p) * 4                          # biases (f32)
        b += 2 * tm_ * d_out_p * osize                        # out tiles
        b += tm_ * th_ * (4 + csize)                          # f32 GELU + bf16 copy
        if not fused_:
            b += tm_ * d_out_p * 4                            # f32 accumulator
        return b

    # Shrink tiles until the (honest) footprint fits the per-generation budget.
    while footprint(tm_eff, th_eff, fused) > cfg["vmem_cap"]:
        if tm_eff > 64:
            tm_eff = max(64, _round_up(tm_eff // 2, 16))
        elif fused and th_eff > 512:
            fused = False
            th_eff = min(h_full, max(align, 512))
            h_p = _round_up(h_dim, th_eff)
        elif not fused and th_eff > 128:
            th_eff = max(128, _round_up(th_eff // 2, 128))
            h_p = _round_up(h_dim, th_eff)
        else:
            break

    t_p = _round_up(t, tm_eff)
    grid = (t_p // tm_eff,) if fused else (t_p // tm_eff, h_p // th_eff)
    vmem_limit = int(min(max(footprint(tm_eff, th_eff, fused) * 5 // 4,
                             32 * 1024 * 1024), cfg["vmem_cap"]))

    return dict(t=t, d_in=d_in, h_dim=h_dim, d_out=d_out,
                tm=tm_eff, th=th_eff, t_p=t_p, h_p=h_p,
                d_in_p=d_in_p, d_out_p=d_out_p, fused=fused, grid=grid,
                vmem_limit=vmem_limit, act_bf16=cfg["act_bf16"],
                weight_buffers=cfg["weight_buffers"],
                compute_dtype=compute_dtype, out_dtype=out_dtype)


def prepare_mlp_weights(w1, b1, w2, b2, plan):
    """Pad + transpose weights ONCE (hoisted out of the per-call path).

    w1: (H, D_in), b1: (H,), w2: (D_out, H), b2: (D_out,)  (nn.Linear layout).
    Zero padding is exact: padded hidden units give gelu(0)=0 -> no contribution.
    """
    cd = plan["compute_dtype"]
    h_dim, d_in = w1.shape
    d_out = w2.shape[0]
    w1_t = jnp.zeros((plan["d_in_p"], plan["h_p"]), cd).at[:d_in, :h_dim].set(
        w1.T.astype(cd))
    w2_t = jnp.zeros((plan["h_p"], plan["d_out_p"]), cd).at[:h_dim, :d_out].set(
        w2.T.astype(cd))
    b1p = jnp.zeros((1, plan["h_p"]), jnp.float32).at[0, :h_dim].set(
        b1.astype(jnp.float32))
    b2p = jnp.zeros((1, plan["d_out_p"]), jnp.float32).at[0, :d_out].set(
        b2.astype(jnp.float32))
    return w1_t, b1p, w2_t, b2p


def mlp_pallas_prepared(x, params, plan):
    """Run the Mlp forward with pre-padded weights."""
    w1_t, b1p, w2_t, b2p = params
    *lead, d_in = x.shape
    t = math.prod(lead) if lead else 1
    assert t == plan["t"] and d_in == plan["d_in"]

    cd = plan["compute_dtype"]
    tm, th = plan["tm"], plan["th"]
    t_p, h_p = plan["t_p"], plan["h_p"]
    d_in_p, d_out_p = plan["d_in_p"], plan["d_out_p"]

    xp = jnp.zeros((t_p, d_in_p), cd).at[:t, :d_in].set(
        x.reshape(t, d_in).astype(cd))

    csize = jnp.dtype(cd).itemsize
    n_row_tiles = t_p // tm
    cost = pl.CostEstimate(
        flops=2 * t_p * h_p * (d_in_p + d_out_p),
        transcendentals=t_p * h_p,
        bytes_accessed=(xp.size * csize
                        + (1 if plan["fused"] else n_row_tiles)
                        * (w1_t.size + w2_t.size) * csize
                        + (b1p.size + b2p.size) * 4
                        + t_p * d_out_p * jnp.dtype(plan["out_dtype"]).itemsize),
    )

    if plan["fused"]:
        kernel = functools.partial(_mlp_kernel_fused, act_bf16=plan["act_bf16"])
        grid_spec = pltpu.PrefetchScalarGridSpec(
            num_scalar_prefetch=0,
            grid=plan["grid"],
            in_specs=[
                pl.BlockSpec((tm, d_in_p), lambda i: (i, 0)),
                # grid-invariant index maps: weights / biases DMA'd exactly once
                pl.BlockSpec((d_in_p, h_p), lambda i: (0, 0)),
                pl.BlockSpec((1, h_p), lambda i: (0, 0)),
                pl.BlockSpec((h_p, d_out_p), lambda i: (0, 0)),
                pl.BlockSpec((1, d_out_p), lambda i: (0, 0)),
            ],
            out_specs=pl.BlockSpec((tm, d_out_p), lambda i: (i, 0)),
        )
        dims = ("parallel",)
    else:
        kernel = functools.partial(_mlp_kernel_split, act_bf16=plan["act_bf16"])
        nbuf = plan["weight_buffers"]
        grid_spec = pltpu.PrefetchScalarGridSpec(
            num_scalar_prefetch=0,
            grid=plan["grid"],
            in_specs=[
                pl.BlockSpec((tm, d_in_p), lambda i, k: (i, 0)),
                _streamed_spec((d_in_p, th), lambda i, k: (0, k), nbuf),
                pl.BlockSpec((1, th), lambda i, k: (0, k)),
                _streamed_spec((th, d_out_p), lambda i, k: (k, 0), nbuf),
                pl.BlockSpec((1, d_out_p), lambda i, k: (0, 0)),
            ],
            out_specs=pl.BlockSpec((tm, d_out_p), lambda i, k: (i, 0)),
            scratch_shapes=[pltpu.VMEM((tm, d_out_p), jnp.float32)],
        )
        dims = ("parallel", "arbitrary")

    out = pl.pallas_call(
        kernel,
        out_shape=jax.ShapeDtypeStruct((t_p, d_out_p), plan["out_dtype"]),
        grid_spec=grid_spec,
        compiler_params=pltpu.CompilerParams(
            dimension_semantics=dims,
            vmem_limit_bytes=plan["vmem_limit"],
        ),
        cost_estimate=cost,
    )(xp, w1_t, b1p, w2_t, b2p)

    return out[:t, :plan["d_out"]].reshape(*lead, plan["d_out"])


def mlp_pallas(x, w1, b1, w2, b2, *, tm=None, th=None,
               compute_dtype=jnp.bfloat16):
    """Convenience one-shot wrapper (plans + pads weights per call)."""
    *lead, d_in = x.shape
    t = math.prod(lead) if lead else 1
    plan = plan_mlp(t, d_in, w1.shape[0], w2.shape[0], tm=tm, th=th,
                    compute_dtype=compute_dtype, out_dtype=x.dtype)
    params = prepare_mlp_weights(w1, b1, w2, b2, plan)
    return mlp_pallas_prepared(x, params, plan)


def mlp_ref(x, w1, b1, w2, b2, *, act_bf16, compute_dtype=jnp.bfloat16):
    """Pure-JAX reference mirroring the kernel's operand rounding."""
    f32 = jnp.float32
    xb = x.astype(compute_dtype)
    w1b = w1.T.astype(compute_dtype)
    w2b = w2.T.astype(compute_dtype)
    h = jnp.dot(xb, w1b, preferred_element_type=f32) + b1.astype(f32)
    erf = jax.lax.erf(h * f32(0.7071067811865476))
    if act_bf16:
        g = h.astype(jnp.bfloat16) * (erf.astype(jnp.bfloat16) + 1.0) * 0.5
    else:
        g = 0.5 * h * (1.0 + erf)
    g = g.astype(compute_dtype)
    out = jnp.dot(g, w2b, preferred_element_type=f32) + b2.astype(f32)
    return out.astype(x.dtype)


if __name__ == "__main__":
    key = jax.random.PRNGKey(0)
    keys = jax.random.split(key, 10)

    # --- test 1: module-like small shapes (fused, weights-resident path) ------
    B, N = 2, 8
    in_features, hidden_features, out_features = 32, 64, 32
    x = jax.random.normal(keys[0], (B, N, in_features), jnp.float32)
    w1 = jax.random.normal(keys[1], (hidden_features, in_features), jnp.float32) * 0.02
    b1 = jax.random.normal(keys[2], (hidden_features,), jnp.float32) * 0.02
    w2 = jax.random.normal(keys[3], (out_features, hidden_features), jnp.float32) * 0.02
    b2 = jax.random.normal(keys[4], (out_features,), jnp.float32) * 0.02

    plan = plan_mlp(B * N, in_features, hidden_features, out_features,
                    out_dtype=x.dtype)
    params = prepare_mlp_weights(w1, b1, w2, b2, plan)      # hoisted: done once
    out = mlp_pallas_prepared(x, params, plan)
    jax.block_until_ready(out)
    assert out.shape == (B, N, out_features)
    ref = mlp_ref(x, w1, b1, w2, b2, act_bf16=plan["act_bf16"])
    err = jnp.max(jnp.abs(out - ref))
    assert jnp.allclose(out, ref, atol=2e-3, rtol=2e-2), \
        f"fused path mismatch, max err {err}"

    # --- test 2: force multi-row-tile + multi-H-tile accumulator path ---------
    B2, N2 = 2, 64
    in2, hid2, out2 = 32, 256, 32
    x2 = jax.random.normal(keys[5], (B2, N2, in2), jnp.float32)
    w1b_ = jax.random.normal(keys[6], (hid2, in2), jnp.float32) * 0.02
    b1b_ = jax.random.normal(keys[7], (hid2,), jnp.float32) * 0.02
    w2b_ = jax.random.normal(keys[8], (out2, hid2), jnp.float32) * 0.02
    b2b_ = jax.random.normal(keys[9], (out2,), jnp.float32) * 0.02

    plan2 = plan_mlp(B2 * N2, in2, hid2, out2, tm=32, th=128, out_dtype=x2.dtype)
    assert (not plan2["fused"]) and plan2["grid"] == (4, 2), plan2["grid"]
    params2 = prepare_mlp_weights(w1b_, b1b_, w2b_, b2b_, plan2)
    out2_ = mlp_pallas_prepared(x2, params2, plan2)
    jax.block_until_ready(out2_)
    assert out2_.shape == (B2, N2, out2)
    ref2 = mlp_ref(x2, w1b_, b1b_, w2b_, b2b_, act_bf16=plan2["act_bf16"])
    err2 = jnp.max(jnp.abs(out2_ - ref2))
    assert jnp.allclose(out2_, ref2, atol=2e-3, rtol=2e-2), \
        f"split path mismatch, max err {err2}"

    print("KERNEL_OK")
</pallas_src>

<mosaic_0001>
module attributes {stable_mosaic.version = 11 : i64} {
  func.func @_mlp_kernel_fused(%arg0: i32, %arg1: memref<16x128xbf16, #tpu.memory_space<vmem>>, %arg2: memref<128x128xbf16, #tpu.memory_space<vmem>>, %arg3: memref<1x128xf32, #tpu.memory_space<vmem>>, %arg4: memref<128x128xbf16, #tpu.memory_space<vmem>>, %arg5: memref<1x128xf32, #tpu.memory_space<vmem>>, %arg6: memref<16x128xf32, #tpu.memory_space<vmem>>) attributes {dimension_semantics = [#tpu.dimension_semantics<parallel>], iteration_bounds = array<i64: 1>, scalar_prefetch = 0 : i64, scratch_operands = 0 : i64, tpu.core_type = #tpu.core_type<tc>, window_params = [{transform_indices = @transform_0, window_bounds = array<i64: 16, 128>}, {pipeline_mode = #tpu.pipeline_mode<synchronous>, transform_indices = @transform_1, window_bounds = array<i64: 128, 128>}, {pipeline_mode = #tpu.pipeline_mode<synchronous>, transform_indices = @transform_2, window_bounds = array<i64: 1, 128>}, {pipeline_mode = #tpu.pipeline_mode<synchronous>, transform_indices = @transform_3, window_bounds = array<i64: 128, 128>}, {pipeline_mode = #tpu.pipeline_mode<synchronous>, transform_indices = @transform_4, window_bounds = array<i64: 1, 128>}, {transform_indices = @transform_5, window_bounds = array<i64: 16, 128>}]} {
    %c0 = arith.constant 0 : index
    %c0_0 = arith.constant 0 : index
    %0 = vector.load %arg1[%c0, %c0_0] : memref<16x128xbf16, #tpu.memory_space<vmem>>, vector<16x128xbf16>
    %c0_1 = arith.constant 0 : index
    %c0_2 = arith.constant 0 : index
    %1 = vector.load %arg2[%c0_1, %c0_2] : memref<128x128xbf16, #tpu.memory_space<vmem>>, vector<128x128xbf16>
    %cst = arith.constant dense<0.000000e+00> : vector<16x128xf32>
    %2 = tpu.matmul %0, %1, %cst {dimension_numbers = #tpu.dot_dimension_numbers<[1], [0], [0], [1], [0, 0, 1, 1], [], []>} : vector<16x128xbf16>, vector<128x128xbf16>, vector<16x128xf32> -> vector<16x128xf32>
    %c0_3 = arith.constant 0 : index
    %c0_4 = arith.constant 0 : index
    %3 = vector.load %arg3[%c0_3, %c0_4] : memref<1x128xf32, #tpu.memory_space<vmem>>, vector<1x128xf32>
    %4 = vector.broadcast %3 : vector<1x128xf32> to vector<16x128xf32>
    %5 = arith.addf %2, %4 : vector<16x128xf32>
    %cst_5 = arith.constant 0.707106769 : f32
    %6 = vector.broadcast %cst_5 : f32 to vector<16x128xf32>
    %7 = arith.mulf %5, %6 : vector<16x128xf32>
    %8 = math.erf %7 : vector<16x128xf32>
    %9 = arith.truncf %5 : vector<16x128xf32> to vector<16x128xbf16>
    %10 = arith.truncf %8 : vector<16x128xf32> to vector<16x128xbf16>
    %cst_6 = arith.constant 1.000000e+00 : bf16
    %11 = vector.broadcast %cst_6 : bf16 to vector<16x128xbf16>
    %12 = arith.addf %10, %11 : vector<16x128xbf16>
    %13 = arith.mulf %9, %12 : vector<16x128xbf16>
    %cst_7 = arith.constant 5.000000e-01 : bf16
    %14 = vector.broadcast %cst_7 : bf16 to vector<16x128xbf16>
    %15 = arith.mulf %13, %14 : vector<16x128xbf16>
    %c0_8 = arith.constant 0 : index
    %c0_9 = arith.constant 0 : index
    %16 = vector.load %arg4[%c0_8, %c0_9] : memref<128x128xbf16, #tpu.memory_space<vmem>>, vector<128x128xbf16>
    %cst_10 = arith.constant dense<0.000000e+00> : vector<16x128xf32>
    %17 = tpu.matmul %15, %16, %cst_10 {dimension_numbers = #tpu.dot_dimension_numbers<[1], [0], [0], [1], [0, 0, 1, 1], [], []>} : vector<16x128xbf16>, vector<128x128xbf16>, vector<16x128xf32> -> vector<16x128xf32>
    %c0_11 = arith.constant 0 : index
    %c0_12 = arith.constant 0 : index
    %18 = vector.load %arg5[%c0_11, %c0_12] : memref<1x128xf32, #tpu.memory_space<vmem>>, vector<1x128xf32>
    %19 = vector.broadcast %18 : vector<1x128xf32> to vector<16x128xf32>
    %20 = arith.addf %17, %19 : vector<16x128xf32>
    %c0_13 = arith.constant 0 : index
    %c0_14 = arith.constant 0 : index
    %21 = vector.load %arg6[%c0_13, %c0_14] : memref<16x128xf32, #tpu.memory_space<vmem>>, vector<16x128xf32>
    tpu.vector_store %arg6[%c0_13, %c0_14], %20 {strides = array<i32>} : memref<16x128xf32, #tpu.memory_space<vmem>>, vector<16x128xf32>,
    return
  }
  func.func @transform_0(%arg0: i32) -> (i32, i32) {
    %c0_i32 = arith.constant 0 : i32
    %c0_i32_0 = arith.constant 0 : i32
    return %arg0, %c0_i32 : i32, i32
  }
  func.func @transform_1(%arg0: i32) -> (i32, i32) {
    %c0_i32 = arith.constant 0 : i32
    %c0_i32_0 = arith.constant 0 : i32
    %c0_i32_1 = arith.constant 0 : i32
    return %c0_i32, %c0_i32_0 : i32, i32
  }
  func.func @transform_2(%arg0: i32) -> (i32, i32) {
    %c0_i32 = arith.constant 0 : i32
    %c0_i32_0 = arith.constant 0 : i32
    %c0_i32_1 = arith.constant 0 : i32
    return %c0_i32, %c0_i32_0 : i32, i32
  }
  func.func @transform_3(%arg0: i32) -> (i32, i32) {
    %c0_i32 = arith.constant 0 : i32
    %c0_i32_0 = arith.constant 0 : i32
    %c0_i32_1 = arith.constant 0 : i32
    return %c0_i32, %c0_i32_0 : i32, i32
  }
  func.func @transform_4(%arg0: i32) -> (i32, i32) {
    %c0_i32 = arith.constant 0 : i32
    %c0_i32_0 = arith.constant 0 : i32
    %c0_i32_1 = arith.constant 0 : i32
    return %c0_i32, %c0_i32_0 : i32, i32
  }
  func.func @transform_5(%arg0: i32) -> (i32, i32) {
    %c0_i32 = arith.constant 0 : i32
    %c0_i32_0 = arith.constant 0 : i32
    return %arg0, %c0_i32 : i32, i32
  }
}

</mosaic_0001>

<llo_original>
// kernel: tpu_custom_call.1
$region0: #{tpu_custom_call.1}
  #allocation0 [shape = 'u32[]', space=smem, size = 0x4, offset = 0x4, fixed_abs, tag = 'smem constant byte address 0x4 - core index']
  #allocation1 [shape = 'u32[144,128]{1,0:T(1,128)}', space=vmem, size = 0x12000, scoped, tag = 'internal scratch']
  %s0 = inlined_call_operand.hbm [shape: bf16[16,128], index: 0, kind: input, shape index: {}]
  %s1 = inlined_call_operand.hbm [shape: bf16[128,128], index: 1, kind: input, shape index: {}]
  %s2 = inlined_call_operand.vmem [shape: f32[1,128], index: 2, kind: input, shape index: {}]
  %s3 = inlined_call_operand.hbm [shape: bf16[128,128], index: 3, kind: input, shape index: {}]
  %s4 = inlined_call_operand.vmem [shape: f32[1,128], index: 4, kind: input, shape index: {}]
  %s5 = inlined_call_operand.hbm [shape: f32[16,128], index: 5, kind: output, shape index: {}]
  %s6 = sld [smem:[#allocation0]]
  $region42: #{tpu_custom_call.1} parent=0
    _
  %s8 = ssub.s32 1, %s6
  %s9 = scalar_select 0, %s8, %s6
  $region1: #{tpu_custom_call.1} parent=0
    #allocation2 [shape = 'u8[4096]{0}', space=vmem, size = 0x1000, scoped, tag = 'input window, operand 0, single buffered']
    #allocation3 [shape = 's32[1]{0}', space=sflag, size = 0x4, scoped, tag = 'scoped memory for tpu_custom_call.1']
    #allocation4 [shape = 's32[1]{0}', space=sflag, size = 0x4, scoped, tag = 'scoped memory for tpu_custom_call.1']
    #allocation5 [shape = 'u8[32768]{0}', space=vmem, size = 0x8000, scoped, tag = 'input window, operand 1, single buffered']
    #allocation6 [shape = 's32[1]{0}', space=sflag, size = 0x4, scoped, tag = 'scoped memory for tpu_custom_call.1']
    #allocation7 [shape = 'u8[32768]{0}', space=vmem, size = 0x8000, scoped, tag = 'input window, operand 3, single buffered']
    #allocation8 [shape = 'u8[8192]{0}', space=vmem, size = 0x2000, scoped, tag = 'output window, operand 0, single buffered']
    %10 = vsyncpa [#allocation3], 0
    %11 = vsyncpa [#allocation6], 0
    %12 = vsyncpa [#allocation4], 0
    // Predicated region
    $region2: #{tpu_custom_call.1} parent=1 // pred_check
      _
    $region3: #{tpu_custom_call.1} parent=1 // pred_check_branch
      %14 = sbr.rel (0) target = $region5
    $region4: #{tpu_custom_call.1} parent=1 // pred_region
      %s16 = ssub.s32 128, 128
      %17 = vsyncadd [#allocation3], %s16
      %s18 = sshll.u32 [#allocation2], 4
      %s19 = int_to_ptr.vmem [resolvable:$true] %s18
      %24 = dma.hbm_to_vmem [thread:$0]  %s0, 128, %s19, [#allocation3], 64, 64, 4
    $region5: #{tpu_custom_call.1} parent=1 // pred_fallthru
      _
    // Predicated region
    $region6: #{tpu_custom_call.1} parent=1 // pred_check
      _
    $region7: #{tpu_custom_call.1} parent=1 // pred_check_branch
      %26 = sbr.rel (0) target = $region9
    $region8: #{tpu_custom_call.1} parent=1 // pred_region
      %s28 = ssub.s32 1024, 1024
      %29 = vsyncadd [#allocation6], %s28
      %s30 = sshll.u32 [#allocation5], 4
      %s31 = int_to_ptr.vmem [resolvable:$true] %s30
      %36 = dma.hbm_to_vmem [thread:$0]  %s1, 1024, %s31, [#allocation6], 64, 64, 4
    $region9: #{tpu_custom_call.1} parent=1 // pred_fallthru
      _
    // Predicated region
    $region10: #{tpu_custom_call.1} parent=1 // pred_check
      _
    $region11: #{tpu_custom_call.1} parent=1 // pred_check_branch
      %38 = sbr.rel (0) target = $region13
    $region12: #{tpu_custom_call.1} parent=1 // pred_region
      _
    $region13: #{tpu_custom_call.1} parent=1 // pred_fallthru
      _
    // Predicated region
    $region14: #{tpu_custom_call.1} parent=1 // pred_check
      _
    $region15: #{tpu_custom_call.1} parent=1 // pred_check_branch
      %40 = sbr.rel (0) target = $region17
    $region16: #{tpu_custom_call.1} parent=1 // pred_region
      %s42 = ssub.s32 1024, 1024
      %43 = vsyncadd [#allocation6], %s42
      %s44 = sshll.u32 [#allocation7], 4
      %s45 = int_to_ptr.vmem [resolvable:$true] %s44
      %50 = dma.hbm_to_vmem [thread:$0]  %s3, 1024, %s45, [#allocation6], 64, 64, 4
    $region17: #{tpu_custom_call.1} parent=1 // pred_fallthru
      _
    // Predicated region
    $region18: #{tpu_custom_call.1} parent=1 // pred_check
      _
    $region19: #{tpu_custom_call.1} parent=1 // pred_check_branch
      %52 = sbr.rel (0) target = $region21
    $region20: #{tpu_custom_call.1} parent=1 // pred_region
      _
    $region21: #{tpu_custom_call.1} parent=1 // pred_fallthru
      _
    // Predicated region
    $region22: #{tpu_custom_call.1} parent=1 // pred_check
      _
    $region23: #{tpu_custom_call.1} parent=1 // pred_check_branch
      %54 = sbr.rel (0) target = $region25
    $region24: #{tpu_custom_call.1} parent=1 // pred_region
      %55 = dma.done [#allocation3], 128
    $region25: #{tpu_custom_call.1} parent=1 // pred_fallthru
      _
    // Predicated region
    $region26: #{tpu_custom_call.1} parent=1 // pred_check
      _
    $region27: #{tpu_custom_call.1} parent=1 // pred_check_branch
      %57 = sbr.rel (0) target = $region29
    $region28: #{tpu_custom_call.1} parent=1 // pred_region
      %58 = dma.done [#allocation6], 1024
    $region29: #{tpu_custom_call.1} parent=1 // pred_fallthru
      _
    // Predicated region
    $region30: #{tpu_custom_call.1} parent=1 // pred_check
      _
    $region31: #{tpu_custom_call.1} parent=1 // pred_check_branch
      %60 = sbr.rel (0) target = $region33
    $region32: #{tpu_custom_call.1} parent=1 // pred_region
      %61 = dma.done [#allocation6], 1024
    $region33: #{tpu_custom_call.1} parent=1 // pred_fallthru
      _
    %v65 = vld [vmem:[#allocation2] sm:$0xf]
    %v66 = vld [vmem:[#allocation2 + $0x4] sm:$0xf]
    %v67 = vld [vmem:[#allocation5] sm:$0xf]
    %v68 = vld [vmem:[#allocation5 + $0x4] sm:$0xf]
    %v69 = vld [vmem:[#allocation5 + $0x8] sm:$0xf]
    %v70 = vld [vmem:[#allocation5 + $0xc] sm:$0xf]
    %v71 = vld [vmem:[#allocation5 + $0x10] sm:$0xf]
    %v72 = vld [vmem:[#allocation5 + $0x14] sm:$0xf]
    %v73 = vld [vmem:[#allocation5 + $0x18] sm:$0xf]
    %v74 = vld [vmem:[#allocation5 + $0x1c] sm:$0xf]
    %v75 = vld [vmem:[#allocation5 + $0x20] sm:$0xf]
    %v76 = vld [vmem:[#allocation5 + $0x24] sm:$0xf]
    %v77 = vld [vmem:[#allocation5 + $0x28] sm:$0xf]
    %v78 = vld [vmem:[#allocation5 + $0x2c] sm:$0xf]
    %v79 = vld [vmem:[#allocation5 + $0x30] sm:$0xf]
    %v80 = vld [vmem:[#allocation5 + $0x34] sm:$0xf]
    %v81 = vld [vmem:[#allocation5 + $0x38] sm:$0xf]
    %v82 = vld [vmem:[#allocation5 + $0x3c] sm:$0xf]
    %v83 = vld [vmem:[%s2] sm:$0x1]
    %v85 = vlaneseq
    %v86 = vshrl.u32 %v85, 7
    %v87 = vsub.s32 0, %v86
    %v88 = vrot.slane %v83, %v87
    %v92 = vunpack.c.l.b16 %v65
    %v93 = vunpack.c.l.b16 %v66
    %v94 = vpack.c.b16 %v93, %v92
    %v112 = vunpack.c.l.b16 %v67
    %v113 = vunpack.c.l.b16 %v68
    %v114 = vunpack.c.l.b16 %v69
    %v115 = vunpack.c.l.b16 %v70
    %v116 = vunpack.c.l.b16 %v71
    %v117 = vunpack.c.l.b16 %v72
    %v118 = vunpack.c.l.b16 %v73
    %v119 = vunpack.c.l.b16 %v74
    %v120 = vunpack.c.l.b16 %v75
    %v121 = vunpack.c.l.b16 %v76
    %v122 = vunpack.c.l.b16 %v77
    %v123 = vunpack.c.l.b16 %v78
    %v124 = vunpack.c.l.b16 %v79
    %v125 = vunpack.c.l.b16 %v80
    %v126 = vunpack.c.l.b16 %v81
    %v127 = vunpack.c.l.b16 %v82
    %v128 = vpack.c.b16 %v113, %v112
    %v129 = vpack.c.b16 %v115, %v114
    %v130 = vpack.c.b16 %v117, %v116
    %v131 = vpack.c.b16 %v119, %v118
    %v132 = vpack.c.b16 %v121, %v120
    %v133 = vpack.c.b16 %v123, %v122
    %v134 = vpack.c.b16 %v125, %v124
    %v135 = vpack.c.b16 %v127, %v126
    %144 = vmatprep.subr.bf16.mxu0 0
    %145 = vmatpush1.bf16.msra.mxu0 %v128
    %146 = vmatprep.subr.bf16.mxu0 0
    %147 = vmatpush1.bf16.msra.mxu0 %v129
    %148 = vmatprep.subr.bf16.mxu0 0
    %149 = vmatpush1.bf16.msra.mxu0 %v130
    %150 = vmatprep.subr.bf16.mxu0 0
    %151 = vmatpush1.bf16.msra.mxu0 %v131
    %152 = vmatprep.subr.bf16.mxu0 0
    %153 = vmatpush1.bf16.msra.mxu0 %v132
    %154 = vmatprep.subr.bf16.mxu0 0
    %155 = vmatpush1.bf16.msra.mxu0 %v133
    %156 = vmatprep.subr.bf16.mxu0 0
    %157 = vmatpush1.bf16.msra.mxu0 %v134
    %158 = vmatprep.subr.bf16.mxu0 0
    %159 = vmatpush1.bf16.msra.mxu0 %v135
    %160 = vmatprep.subr.bf16.mxu0 0
    %161 = vmatpush1.bf16.msra.mxu0 0
    %162 = vmatprep.subr.bf16.mxu0 0
    %163 = vmatpush1.bf16.msra.mxu0 0
    %164 = vmatprep.subr.bf16.mxu0 0
    %165 = vmatpush1.bf16.msra.mxu0 0
    %166 = vmatprep.subr.bf16.mxu0 0
    %167 = vmatpush1.bf16.msra.mxu0 0
    %168 = vmatprep.subr.bf16.mxu0 0
    %169 = vmatpush1.bf16.msra.mxu0 0
    %170 = vmatprep.subr.bf16.mxu0 0
    %171 = vmatpush1.bf16.msra.mxu0 0
    %172 = vmatprep.subr.bf16.mxu0 0
    %173 = vmatpush1.bf16.msra.mxu0 0
    %174 = vmatprep.subr.bf16.mxu0 0
    %175 = vmatpush1.bf16.msra.mxu0 0
    %176 = vmatprep.mubr.bf16.mxu0 0
    %177 = vmatmul.mubr.bf16.gmra.mrb[0].mxu0 %v94
    %v178 = vpop.f32.mrb[0].mxu0
    %v179 = vadd.f32 %v88, %v178
    %v180 = vpop.f32.mrb[0].mxu0
    %v181 = vpop.f32.mrb[0].mxu0
    %v182 = vadd.f32 %v88, %v181
    %v183 = vpop.f32.mrb[0].mxu0
    %184 = vdwg.mxu0
    %v185 = vmul.f32 %v179, 0.70710677
    %v186 = vmul.f32 %v182, 0.70710677
    %v187 = verf.f32.pop %v185
    %v188 = verf.f32.pop %v186
    %v189 = vpack.c.bf16 %v182, %v179
    %v190 = vpack.c.bf16 %v188, %v187
    %v191 = vadd.bf16 %v190, 1065369472
    %v192 = vmul.bf16 %v189, %v191
    %v193 = vmul.bf16 %v192, 1056980736
    %v194 = vld [vmem:[#allocation7] sm:$0xf]
    %v195 = vld [vmem:[#allocation7 + $0x4] sm:$0xf]
    %v196 = vld [vmem:[#allocation7 + $0x8] sm:$0xf]
    %v197 = vld [vmem:[#allocation7 + $0xc] sm:$0xf]
    %v198 = vld [vmem:[#allocation7 + $0x10] sm:$0xf]
    %v199 = vld [vmem:[#allocation7 + $0x14] sm:$0xf]
    %v200 = vld [vmem:[#allocation7 + $0x18] sm:$0xf]
    %v201 = vld [vmem:[#allocation7 + $0x1c] sm:$0xf]
    %v202 = vld [vmem:[#allocation7 + $0x20] sm:$0xf]
    %v203 = vld [vmem:[#allocation7 + $0x24] sm:$0xf]
    %v204 = vld [vmem:[#allocation7 + $0x28] sm:$0xf]
    %v205 = vld [vmem:[#allocation7 + $0x2c] sm:$0xf]
    %v206 = vld [vmem:[#allocation7 + $0x30] sm:$0xf]
    %v207 = vld [vmem:[#allocation7 + $0x34] sm:$0xf]
    %v208 = vld [vmem:[#allocation7 + $0x38] sm:$0xf]
    %v209 = vld [vmem:[#allocation7 + $0x3c] sm:$0xf]
    %v210 = vld [vmem:[%s4] sm:$0x1]
    %v212 = vlaneseq
    %v213 = vshrl.u32 %v212, 7
    %v214 = vsub.s32 0, %v213
    %v215 = vrot.slane %v210, %v214
    %v233 = vunpack.c.l.b16 %v194
    %v234 = vunpack.c.l.b16 %v195
    %v235 = vunpack.c.l.b16 %v196
    %v236 = vunpack.c.l.b16 %v197
    %v237 = vunpack.c.l.b16 %v198
    %v238 = vunpack.c.l.b16 %v199
    %v239 = vunpack.c.l.b16 %v200
    %v240 = vunpack.c.l.b16 %v201
    %v241 = vunpack.c.l.b16 %v202
    %v242 = vunpack.c.l.b16 %v203
    %v243 = vunpack.c.l.b16 %v204
    %v244 = vunpack.c.l.b16 %v205
    %v245 = vunpack.c.l.b16 %v206
    %v246 = vunpack.c.l.b16 %v207
    %v247 = vunpack.c.l.b16 %v208
    %v248 = vunpack.c.l.b16 %v209
    %v249 = vpack.c.b16 %v234, %v233
    %v250 = vpack.c.b16 %v236, %v235
    %v251 = vpack.c.b16 %v238, %v237
    %v252 = vpack.c.b16 %v240, %v239
    %v253 = vpack.c.b16 %v242, %v241
    %v254 = vpack.c.b16 %v244, %v243
    %v255 = vpack.c.b16 %v246, %v245
    %v256 = vpack.c.b16 %v248, %v247
    %265 = vmatprep.subr.bf16.mxu0 0
    %266 = vmatpush1.bf16.msra.mxu0 %v249
    %267 = vmatprep.subr.bf16.mxu0 0
    %268 = vmatpush1.bf16.msra.mxu0 %v250
    %269 = vmatprep.subr.bf16.mxu0 0
    %270 = vmatpush1.bf16.msra.mxu0 %v251
    %271 = vmatprep.subr.bf16.mxu0 0
    %272 = vmatpush1.bf16.msra.mxu0 %v252
    %273 = vmatprep.subr.bf16.mxu0 0
    %274 = vmatpush1.bf16.msra.mxu0 %v253
    %275 = vmatprep.subr.bf16.mxu0 0
    %276 = vmatpush1.bf16.msra.mxu0 %v254
    %277 = vmatprep.subr.bf16.mxu0 0
    %278 = vmatpush1.bf16.msra.mxu0 %v255
    %279 = vmatprep.subr.bf16.mxu0 0
    %280 = vmatpush1.bf16.msra.mxu0 %v256
    %281 = vmatprep.subr.bf16.mxu0 0
    %282 = vmatpush1.bf16.msra.mxu0 0
    %283 = vmatprep.subr.bf16.mxu0 0
    %284 = vmatpush1.bf16.msra.mxu0 0
    %285 = vmatprep.subr.bf16.mxu0 0
    %286 = vmatpush1.bf16.msra.mxu0 0
    %287 = vmatprep.subr.bf16.mxu0 0
    %288 = vmatpush1.bf16.msra.mxu0 0
    %289 = vmatprep.subr.bf16.mxu0 0
    %290 = vmatpush1.bf16.msra.mxu0 0
    %291 = vmatprep.subr.bf16.mxu0 0
    %292 = vmatpush1.bf16.msra.mxu0 0
    %293 = vmatprep.subr.bf16.mxu0 0
    %294 = vmatpush1.bf16.msra.mxu0 0
    %295 = vmatprep.subr.bf16.mxu0 0
    %296 = vmatpush1.bf16.msra.mxu0 0
    %297 = vmatprep.mubr.bf16.mxu0 0
    %298 = vmatmul.mubr.bf16.gmra.mrb[0].mxu0 %v193
    %v299 = vpop.f32.mrb[0].mxu0
    %v300 = vadd.f32 %v215, %v299
    %v301 = vpop.f32.mrb[0].mxu0
    %v302 = vpop.f32.mrb[0].mxu0
    %v303 = vadd.f32 %v215, %v302
    %v304 = vpop.f32.mrb[0].mxu0
    %305 = vdwg.mxu0
    %306 = vst [vmem:[#allocation8] sm:$0xff] %v300
    %307 = vst [vmem:[#allocation8 + $0x8] sm:$0xff] %v303
    // Predicated region
    $region34: #{tpu_custom_call.1} parent=1 // pred_check
      _
    $region35: #{tpu_custom_call.1} parent=1 // pred_check_branch
      %309 = sbr.rel (0) target = $region37
    $region36: #{tpu_custom_call.1} parent=1 // pred_region
      %s311 = ssub.s32 256, 256
      %312 = vsyncadd [#allocation4], %s311
      %s313 = sshll.u32 [#allocation8], 4
      %s314 = int_to_ptr.vmem [resolvable:$true] %s313
      %319 = dma.vmem_to_hbm [thread:$0]  %s314, 256, %s5, [#allocation4], 128, 128, 8
    $region37: #{tpu_custom_call.1} parent=1 // pred_fallthru
      _
    // Predicated region
    $region38: #{tpu_custom_call.1} parent=1 // pred_check
      _
    $region39: #{tpu_custom_call.1} parent=1 // pred_check_branch
      %321 = sbr.rel (0) target = $region41
    $region40: #{tpu_custom_call.1} parent=1 // pred_region
      %322 = dma.done [#allocation4], 256
    $region41: #{tpu_custom_call.1} parent=1 // pred_fallthru
      _
    %323 = vsyncpa [#allocation3], 1
    %324 = vsyncpa [#allocation6], 1
    %325 = vsyncpa [#allocation4], 1

</llo_original>
